<compile_context>
chip_gen: v7x
topology: tpu7x:2x2x1
jax: 0.10.0
libtpu: 0.0.40
codegen_flags: <defaults>
</compile_context>

<pallas_src>
import math

import jax
import jax.numpy as jnp
from jax.experimental import pallas as pl
from jax.experimental.pallas import tpu as pltpu


# ----------------------------------------------------------------------------
# Kernel
# ----------------------------------------------------------------------------
def _s2d_conv_kernel(xm_ref, xh_ref, w_ref, b_ref, o_ref):
    # xm_ref : (1, TH, Wp, 4C) bf16  padded-s2d rows [r*TH, (r+1)*TH)
    # xh_ref : (1, 1,  Wp, 4C) bf16  1-row halo: padded-s2d row (r+1)*TH
    # w_ref  : (4C, 4C)        bf16  all four 2x2-conv taps, concatenated on N
    # b_ref  : (1, C)          f32   bias
    # o_ref  : (1, TH, Wp, C)        output tile in pitch space (cropped later)
    _, TH, Wp, C4 = xm_ref.shape
    C = C4 // 4
    M = TH * Wp

    xm = xm_ref[0].reshape(M, C4)          # contiguous flatten (Wp % 8 == 0)
    xh = xh_ref[0].reshape(Wp, C4)
    w = w_ref[...]

    # One fused MXU matmul per tile: all four taps share the K=4C contraction
    # and N=4C keeps the MXU lanes full.  Tiny extra matmul for the halo row.
    y = jnp.dot(xm, w, preferred_element_type=jnp.float32)      # (M, 4C)
    yh = jnp.dot(xh, w, preferred_element_type=jnp.float32)     # (Wp, 4C)

    # dr=1 ("next spatial row") taps: shift the result by Wp rows and append
    # the halo row.  Wp is a multiple of 8 -> sublane-aligned slice/concat.
    if M > Wp:
        r1 = jnp.concatenate([y[Wp:, 2 * C:], yh[:, 2 * C:]], axis=0)  # (M,2C)
    else:
        r1 = yh[:, 2 * C:]

    # dc=1 taps are summed first so only ONE (+1)-row (misaligned) shift is
    # needed; the element that wraps to the end lands in the cropped pitch
    # column, so its value is irrelevant.
    e = y[:, C:2 * C] + r1[:, C:]
    e1 = jnp.concatenate([e[1:], e[:1]], axis=0)

    # Combine everything in vregs; single contiguous, unmasked store.
    out = y[:, :C] + r1[:, :C] + e1 + b_ref[...]
    o_ref[0] = out.reshape(TH, Wp, C).astype(o_ref.dtype)


# ----------------------------------------------------------------------------
# VMEM-aware tiling
# ----------------------------------------------------------------------------
def _round_up(x, m):
    return ((x + m - 1) // m) * m


def _tpu_vmem_capacity():
    """Physical VMEM per core; conservative 64 MiB fallback (v7x size)."""
    try:
        cap = getattr(pltpu.get_tpu_info(), "vmem_capacity_bytes", None)
        if cap:
            return int(cap)
    except Exception:
        pass
    return 64 * 1024 * 1024


def _vmem_step_bytes(TH, Wp, C, out_itemsize):
    """Per-grid-step VMEM estimate: double-buffered blocks + resident weights
    + in-kernel f32 temporaries (y, yh, r1, e, e1, out + slack)."""
    C4 = 4 * C
    M = TH * Wp
    main_in = M * C4 * 2                  # bf16 input block
    halo_in = Wp * C4 * 2                 # bf16 halo block
    out_blk = M * C * out_itemsize        # output block
    weights = C4 * C4 * 2                 # bf16 folded weights (resident)
    bias = max(C, 128) * 4
    pipelined = 2 * (main_in + halo_in + out_blk + weights) + bias
    temps = 4 * (M * C4 + Wp * C4 + M * 2 * C + 3 * M * C) + 2 * M * C4
    return pipelined + temps


def _pick_tile_rows(B, Ho, Wp, C, out_itemsize, vmem_budget, min_grid_steps=2):
    """Largest TH = ceil(Ho/nR) that fits the VMEM budget while keeping at
    least `min_grid_steps` grid steps (so v7x megacore can split the grid)."""
    for nR in range(1, Ho + 1):
        TH = -(-Ho // nR)
        if _vmem_step_bytes(TH, Wp, C, out_itemsize) > vmem_budget:
            continue
        if B * nR < min_grid_steps and nR < Ho:
            continue
        return TH
    return 1


# ----------------------------------------------------------------------------
# Wrapper
# ----------------------------------------------------------------------------
def _space_to_depth_pad(x_nchw, Wp, Ho_p, compute_dtype=jnp.bfloat16):
    """One fused pass: NCHW -> bf16 -> 2x2 space-to-depth NHWC -> zero pad
    (1 row top + alignment rows bottom, 1 col left + alignment cols right).
    out[b, 1+r, 1+m, (py*2+px)*C + c] = x[b, c, 2r+py, 2m+px]."""
    B, C, H, W = x_nchw.shape
    Ho, Wo = H // 2, W // 2
    x = x_nchw.astype(compute_dtype)
    x = x.reshape(B, C, Ho, 2, Wo, 2)
    x = jnp.transpose(x, (0, 2, 4, 3, 5, 1)).reshape(B, Ho, Wo, 4 * C)
    return jnp.pad(x, ((0, 0), (1, Ho_p - Ho), (1, Wp - 1 - Wo), (0, 0)))


def _fold_conv_weights(w_oihw, compute_dtype=jnp.bfloat16):
    """(Cout, Cin, 3, 3) -> (4*Cin, 4*Cout): the four (4*Cin, Cout) tap
    matrices of the equivalent 2x2 stride-1 conv over the s2d input,
    concatenated along N so the kernel does a single matmul."""
    Cout, Cin, _, _ = w_oihw.shape
    w = jnp.transpose(w_oihw, (2, 3, 1, 0))      # (ky, kx, Cin, Cout)
    tap = {(0, 1): 0, (1, 0): 1, (1, 1): 2}      # (delta, parity) -> 3x3 tap
    w_all = jnp.zeros((4 * Cin, 4 * Cout), jnp.float32)
    for dr in (0, 1):
        for dc in (0, 1):
            n0 = (dr * 2 + dc) * Cout
            for pr in (0, 1):
                for pc in (0, 1):
                    if (dr, pr) not in tap or (dc, pc) not in tap:
                        continue
                    k0 = (pr * 2 + pc) * Cin
                    w_all = w_all.at[k0:k0 + Cin, n0:n0 + Cout].set(
                        w[tap[(dr, pr)], tap[(dc, pc)]])
    return w_all.astype(compute_dtype)


def downsample_conv(x_nchw, w_all, bias, *, out_dtype=None, channels_last=False,
                    tile_rows=None):
    """3x3 / stride-2 / pad-1 conv via the space-to-depth Pallas kernel."""
    B, C, H, W = x_nchw.shape
    Ho, Wo = H // 2, W // 2
    out_dtype = x_nchw.dtype if out_dtype is None else out_dtype
    out_isz = jnp.dtype(out_dtype).itemsize
    C4 = 4 * C

    Wp = _round_up(Wo + 1, 8)                       # sublane-aligned pitch
    cap = _tpu_vmem_capacity()
    if tile_rows is None:
        TH = _pick_tile_rows(B, Ho, Wp, C, out_isz, vmem_budget=cap // 2)
    else:
        TH = int(tile_rows)
    nR = pl.cdiv(Ho, TH)
    Ho_p = nR * TH                                  # padded output rows

    xsp = _space_to_depth_pad(x_nchw, Wp=Wp, Ho_p=Ho_p)
    est = _vmem_step_bytes(TH, Wp, C, out_isz)
    vmem_limit = min(int(cap * 0.9), max(3 * est, 64 * 1024 * 1024))

    # NOTE: weights/bias have constant index maps; pipeline_mode=pl.Buffered(1)
    # on those specs would halve their resident footprint at very large C.
    y_full = pl.pallas_call(
        _s2d_conv_kernel,
        out_shape=jax.ShapeDtypeStruct((B, Ho_p, Wp, C), out_dtype),
        grid_spec=pltpu.PrefetchScalarGridSpec(
            num_scalar_prefetch=0,
            grid=(B, nR),
            in_specs=[
                # main row tile: padded-s2d rows [r*TH, (r+1)*TH)
                pl.BlockSpec((1, TH, Wp, C4), lambda b, r: (b, r, 0, 0)),
                # 1-row halo: padded-s2d row (r+1)*TH (same array, re-read)
                pl.BlockSpec((1, 1, Wp, C4), lambda b, r: (b, (r + 1) * TH, 0, 0)),
                # folded weights / bias stay resident (constant index maps)
                pl.BlockSpec((C4, C4), lambda b, r: (0, 0)),
                pl.BlockSpec((1, C), lambda b, r: (0, 0)),
            ],
            out_specs=pl.BlockSpec((1, TH, Wp, C), lambda b, r: (b, r, 0, 0)),
        ),
        compiler_params=pltpu.CompilerParams(
            dimension_semantics=("parallel", "parallel"),
            vmem_limit_bytes=vmem_limit),
    )(xsp, xsp, w_all, bias.reshape(1, C).astype(jnp.float32))

    # Free XLA slice: drops pitch/alignment columns and padded rows; fuses
    # into the layout transpose below when one is requested.
    y = y_full[:, :Ho, :Wo, :]
    if not channels_last:
        y = jnp.transpose(y, (0, 3, 1, 2))          # NHWC -> NCHW
    return y


# ----------------------------------------------------------------------------
# Module
# ----------------------------------------------------------------------------
class Downsample:
    """JAX/Pallas port of MemoryDiffusion Downsample (dims=2).

    Defaults match the PyTorch module (NCHW in/out, output dtype = input
    dtype).  For bandwidth-bound shapes pass out_dtype=jnp.bfloat16 and
    channels_last=True to skip the extra output passes."""

    def __init__(self, channels, use_conv, dims=2, key=None, tile_rows=None,
                 out_dtype=None, channels_last=False):
        # TODO(synk): dims in {1, 3} (1D conv / 3D conv with (1,2,2) stride) not implemented.
        assert dims == 2, "only dims=2 is implemented"
        self.channels = channels
        self.use_conv = use_conv
        self.dims = dims
        self.tile_rows = tile_rows
        self.out_dtype = out_dtype
        self.channels_last = channels_last
        if use_conv:
            if key is None:
                key = jax.random.PRNGKey(0)
            k1, k2 = jax.random.split(key)
            fan_in = channels * 3 * 3
            bound = 1.0 / math.sqrt(fan_in)
            # PyTorch Conv2d default init; PyTorch weight layout (Cout, Cin, kh, kw).
            self.w_oihw = jax.random.uniform(
                k1, (channels, channels, 3, 3), jnp.float32, -bound, bound)
            self.bias = jax.random.uniform(
                k2, (channels,), jnp.float32, -bound, bound)
            self.w_all = _fold_conv_weights(self.w_oihw)   # folded bf16 weights

    def __call__(self, x_nchw):
        assert x_nchw.shape[1] == self.channels
        B, C, H, W = x_nchw.shape
        # TODO(synk): odd spatial sizes (PyTorch would give ceil(H/2)) not supported.
        assert H % 2 == 0 and W % 2 == 0, "even spatial dims required"
        if not self.use_conv:
            # AvgPool2d(2, 2): pure data movement + mean; left to XLA.
            return x_nchw.reshape(B, C, H // 2, 2, W // 2, 2).mean(axis=(3, 5))
        return downsample_conv(
            x_nchw, self.w_all, self.bias,
            out_dtype=self.out_dtype, channels_last=self.channels_last,
            tile_rows=self.tile_rows)


# ----------------------------------------------------------------------------
# Reference + tests
# ----------------------------------------------------------------------------
def _reference_forward(x_nchw, w_oihw, bias):
    """Pure-JAX (XLA) f32 reference matching the PyTorch module exactly."""
    y = jax.lax.conv_general_dilated(
        x_nchw, w_oihw, window_strides=(2, 2), padding=((1, 1), (1, 1)),
        dimension_numbers=("NCHW", "OIHW", "NCHW"),
        precision=jax.lax.Precision.HIGHEST)
    return y + bias[None, :, None, None]


if __name__ == "__main__":
    key = jax.random.PRNGKey(0)
    kx, kp = jax.random.split(key)

    B, C, H, W = 2, 4, 16, 16
    x = jax.random.normal(kx, (B, C, H, W), dtype=jnp.float32)

    module = Downsample(channels=C, use_conv=True, dims=2, key=kp)

    y = jax.block_until_ready(module(x))
    y_ref = jax.block_until_ready(_reference_forward(x, module.w_oihw, module.bias))

    assert y.shape == (B, C, H // 2, W // 2), y.shape
    # bf16 matmul operands with f32 accumulation -> relaxed tolerance vs f32 ref.
    assert jnp.allclose(y, y_ref, rtol=2e-2, atol=2e-2), \
        float(jnp.max(jnp.abs(y - y_ref)))

    # Exercise the multi-tile + non-divisible (padded tail) + mid-tile halo path.
    module.tile_rows = 3
    y_tiled = jax.block_until_ready(module(x))
    assert jnp.allclose(y_tiled, y_ref, rtol=2e-2, atol=2e-2), \
        float(jnp.max(jnp.abs(y_tiled - y_ref)))

    # use_conv=False path (avg pool, plain JAX glue).
    pool = Downsample(channels=C, use_conv=False, dims=2)
    y_pool = jax.block_until_ready(pool(x))
    y_pool_ref = x.reshape(B, C, H // 2, 2, W // 2, 2).mean(axis=(3, 5))
    assert jnp.allclose(y_pool, y_pool_ref, rtol=1e-5, atol=1e-5)

    print("KERNEL_OK")
</pallas_src>

<mosaic_0001>
module attributes {stable_mosaic.version = 11 : i64} {
  func.func @_s2d_conv_kernel(%arg0: i32, %arg1: i32, %arg2: memref<1x8x16x16xbf16, #tpu.memory_space<vmem>>, %arg3: memref<1x1x16x16xbf16, #tpu.memory_space<vmem>>, %arg4: memref<16x16xbf16, #tpu.memory_space<vmem>>, %arg5: memref<1x4xf32, #tpu.memory_space<vmem>>, %arg6: memref<1x8x16x4xf32, #tpu.memory_space<vmem>>) attributes {dimension_semantics = [#tpu.dimension_semantics<parallel>, #tpu.dimension_semantics<parallel>], iteration_bounds = array<i64: 2, 1>, scalar_prefetch = 0 : i64, scratch_operands = 0 : i64, tpu.core_type = #tpu.core_type<tc>, window_params = [{transform_indices = @transform_0, window_bounds = array<i64: 1, 8, 16, 16>}, {transform_indices = @transform_1, window_bounds = array<i64: 1, 1, 16, 16>}, {pipeline_mode = #tpu.pipeline_mode<synchronous>, transform_indices = @transform_2, window_bounds = array<i64: 16, 16>}, {pipeline_mode = #tpu.pipeline_mode<synchronous>, transform_indices = @transform_3, window_bounds = array<i64: 1, 4>}, {transform_indices = @transform_4, window_bounds = array<i64: 1, 8, 16, 4>}]} {
    %c0 = arith.constant 0 : index
    %c0_0 = arith.constant 0 : index
    %c0_1 = arith.constant 0 : index
    %c0_2 = arith.constant 0 : index
    %0 = vector.load %arg2[%c0, %c0_0, %c0_1, %c0_2] : memref<1x8x16x16xbf16, #tpu.memory_space<vmem>>, vector<1x8x16x16xbf16>
    %1 = vector.shape_cast %0 : vector<1x8x16x16xbf16> to vector<8x16x16xbf16>
    %2 = vector.shape_cast %1 : vector<8x16x16xbf16> to vector<128x16xbf16>
    %c0_3 = arith.constant 0 : index
    %c0_4 = arith.constant 0 : index
    %c0_5 = arith.constant 0 : index
    %c0_6 = arith.constant 0 : index
    %3 = vector.load %arg3[%c0_3, %c0_4, %c0_5, %c0_6] : memref<1x1x16x16xbf16, #tpu.memory_space<vmem>>, vector<1x1x16x16xbf16>
    %4 = vector.shape_cast %3 : vector<1x1x16x16xbf16> to vector<1x16x16xbf16>
    %5 = vector.shape_cast %4 : vector<1x16x16xbf16> to vector<16x16xbf16>
    %c0_7 = arith.constant 0 : index
    %c0_8 = arith.constant 0 : index
    %6 = vector.load %arg4[%c0_7, %c0_8] : memref<16x16xbf16, #tpu.memory_space<vmem>>, vector<16x16xbf16>
    %cst = arith.constant dense<0.000000e+00> : vector<128x16xf32>
    %7 = tpu.matmul %2, %6, %cst {dimension_numbers = #tpu.dot_dimension_numbers<[1], [0], [0], [1], [0, 0, 1, 1], [], []>} : vector<128x16xbf16>, vector<16x16xbf16>, vector<128x16xf32> -> vector<128x16xf32>
    %cst_9 = arith.constant dense<0.000000e+00> : vector<16x16xf32>
    %8 = tpu.matmul %5, %6, %cst_9 {dimension_numbers = #tpu.dot_dimension_numbers<[1], [0], [0], [1], [0, 0, 1, 1], [], []>} : vector<16x16xbf16>, vector<16x16xbf16>, vector<16x16xf32> -> vector<16x16xf32>
    %9 = vector.extract_strided_slice %7 {offsets = [16, 8], sizes = [112, 8], strides = [1, 1]} : vector<128x16xf32> to vector<112x8xf32>
    %10 = vector.extract_strided_slice %8 {offsets = [0, 8], sizes = [16, 8], strides = [1, 1]} : vector<16x16xf32> to vector<16x8xf32>
    %11 = tpu.concatenate %9, %10 in 0 : vector<112x8xf32>, vector<16x8xf32> -> vector<128x8xf32>
    %12 = vector.extract_strided_slice %7 {offsets = [0, 4], sizes = [128, 4], strides = [1, 1]} : vector<128x16xf32> to vector<128x4xf32>
    %13 = vector.extract_strided_slice %11 {offsets = [0, 4], sizes = [128, 4], strides = [1, 1]} : vector<128x8xf32> to vector<128x4xf32>
    %14 = arith.addf %12, %13 : vector<128x4xf32>
    %15 = vector.extract_strided_slice %14 {offsets = [1, 0], sizes = [127, 4], strides = [1, 1]} : vector<128x4xf32> to vector<127x4xf32>
    %16 = vector.extract_strided_slice %14 {offsets = [0, 0], sizes = [1, 4], strides = [1, 1]} : vector<128x4xf32> to vector<1x4xf32>
    %17 = tpu.concatenate %15, %16 in 0 : vector<127x4xf32>, vector<1x4xf32> -> vector<128x4xf32>
    %18 = vector.extract_strided_slice %7 {offsets = [0, 0], sizes = [128, 4], strides = [1, 1]} : vector<128x16xf32> to vector<128x4xf32>
    %19 = vector.extract_strided_slice %11 {offsets = [0, 0], sizes = [128, 4], strides = [1, 1]} : vector<128x8xf32> to vector<128x4xf32>
    %20 = arith.addf %18, %19 : vector<128x4xf32>
    %21 = arith.addf %20, %17 : vector<128x4xf32>
    %c0_10 = arith.constant 0 : index
    %c0_11 = arith.constant 0 : index
    %22 = vector.load %arg5[%c0_10, %c0_11] : memref<1x4xf32, #tpu.memory_space<vmem>>, vector<1x4xf32>
    %23 = vector.broadcast %22 : vector<1x4xf32> to vector<128x4xf32>
    %24 = arith.addf %21, %23 : vector<128x4xf32>
    %25 = vector.shape_cast %24 : vector<128x4xf32> to vector<8x16x4xf32>
    %c0_12 = arith.constant 0 : index
    %c0_13 = arith.constant 0 : index
    %c0_14 = arith.constant 0 : index
    %c0_15 = arith.constant 0 : index
    %26 = vector.load %arg6[%c0_12, %c0_13, %c0_14, %c0_15] : memref<1x8x16x4xf32, #tpu.memory_space<vmem>>, vector<1x8x16x4xf32>
    %27 = vector.shape_cast %26 : vector<1x8x16x4xf32> to vector<8x16x4xf32>
    %28 = vector.shape_cast %25 : vector<8x16x4xf32> to vector<1x8x16x4xf32>
    tpu.vector_store %arg6[%c0_12, %c0_13, %c0_14, %c0_15], %28 {strides = array<i32>} : memref<1x8x16x4xf32, #tpu.memory_space<vmem>>, vector<1x8x16x4xf32>,
    return
  }
  func.func @transform_0(%arg0: i32, %arg1: i32) -> (i32, i32, i32, i32) {
    %c0_i32 = arith.constant 0 : i32
    %c0_i32_0 = arith.constant 0 : i32
    %c0_i32_1 = arith.constant 0 : i32
    return %arg0, %arg1, %c0_i32, %c0_i32_0 : i32, i32, i32, i32
  }
  func.func @transform_1(%arg0: i32, %arg1: i32) -> (i32, i32, i32, i32) {
    %c1_i32 = arith.constant 1 : i32
    %0 = arith.addi %arg1, %c1_i32 : i32
    %c8_i32 = arith.constant 8 : i32
    %1 = arith.muli %0, %c8_i32 : i32
    %c0_i32 = arith.constant 0 : i32
    %c0_i32_0 = arith.constant 0 : i32
    %c0_i32_1 = arith.constant 0 : i32
    return %arg0, %1, %c0_i32, %c0_i32_0 : i32, i32, i32, i32
  }
  func.func @transform_2(%arg0: i32, %arg1: i32) -> (i32, i32) {
    %c0_i32 = arith.constant 0 : i32
    %c0_i32_0 = arith.constant 0 : i32
    %c0_i32_1 = arith.constant 0 : i32
    return %c0_i32, %c0_i32_0 : i32, i32
  }
  func.func @transform_3(%arg0: i32, %arg1: i32) -> (i32, i32) {
    %c0_i32 = arith.constant 0 : i32
    %c0_i32_0 = arith.constant 0 : i32
    %c0_i32_1 = arith.constant 0 : i32
    return %c0_i32, %c0_i32_0 : i32, i32
  }
  func.func @transform_4(%arg0: i32, %arg1: i32) -> (i32, i32, i32, i32) {
    %c0_i32 = arith.constant 0 : i32
    %c0_i32_0 = arith.constant 0 : i32
    %c0_i32_1 = arith.constant 0 : i32
    return %arg0, %arg1, %c0_i32, %c0_i32_0 : i32, i32, i32, i32
  }
}

</mosaic_0001>

<llo_original>
// kernel: tpu_custom_call.1
$region0: #{tpu_custom_call.1}
  #allocation0 [shape = 'u32[]', space=smem, size = 0x4, offset = 0x4, fixed_abs, tag = 'smem constant byte address 0x4 - core index']
  #allocation1 [shape = 'u32[144,128]{1,0:T(1,128)}', space=vmem, size = 0x12000, scoped, tag = 'internal scratch']
  %s0 = inlined_call_operand.hbm [shape: bf16[2,9,16,16], index: 0, kind: input, shape index: {}]
  %s1 = inlined_call_operand.hbm [shape: bf16[2,9,16,16], index: 1, kind: input, shape index: {}]
  %s2 = inlined_call_operand.hbm [shape: bf16[16,16], index: 2, kind: input, shape index: {}]
  %s3 = inlined_call_operand.vmem [shape: f32[1,4], index: 3, kind: input, shape index: {}]
  %s4 = inlined_call_operand.vmem [shape: f32[2,8,16,4], index: 4, kind: output, shape index: {}]
  %s5 = sld [smem:[#allocation0]]
  $region61: #{tpu_custom_call.1} parent=0
    _
  %s7 = ssub.s32 1, %s5
  %s8 = scalar_select 0, %s7, %s5
  $region1: #{tpu_custom_call.1} parent=0
    #allocation2 [shape = 'u8[65536]{0}', space=vmem, size = 0x10000, scoped, tag = 'input window, operand 0']
    #allocation3 [shape = 's32[2]{0}', space=sflag, size = 0x8, scoped, tag = 'scoped memory for tpu_custom_call.1']
    #allocation4 [shape = 'u8[8192]{0}', space=vmem, size = 0x2000, scoped, tag = 'input window, operand 1']
    #allocation5 [shape = 's32[2]{0}', space=sflag, size = 0x8, scoped, tag = 'scoped memory for tpu_custom_call.1']
    #allocation6 [shape = 'u8[4096]{0}', space=vmem, size = 0x1000, scoped, tag = 'input window, operand 2, single buffered']
    %9 = vsyncpa [#allocation3], 0
    %s10 = scalar_lea.sflag [#allocation3], 1
    %11 = vsyncpa %s10, 0
    %12 = vsyncpa [#allocation5], 0
    %s13 = scalar_lea.sflag [#allocation5], 1
    %14 = vsyncpa %s13, 0
    loop: start=0, step=1, limit=4
    $region2: #{tpu_custom_call.1} parent=1 // loop_pre_header
      _
    $region3: #{tpu_custom_call.1} parent=1 // loop_header
      %s16 = sphi 0, %s20
      %p17 = scmp.ge.s32.totalorder %s16, 4
      %s23 = sphi 0, %s35
      %s24 = sphi 0, %s31
      %s25 = sphi 0, %s23
      %s26 = sphi 0, %s24
      %s27 = sphi 0, %s25
      %s28 = sphi 0, %s26
      %s40 = sphi 0, %s42
      %s43 = sphi 0, %s40
      %s44 = sphi 0, %s43
      %s60 = sphi 0, %s44
      %s72 = sphi 0, %s74
      %s75 = sphi 0, %s72
      %s76 = sphi 0, %s75
      %s92 = sphi 0, %s76
      %s96 = sphi 0, %s96
      %s98 = sphi 0, %s96
      %s99 = sphi 0, %s98
      %s113 = sphi 0, %s99
      %s117 = sphi 0, %s117
      %s119 = sphi 0, %s117
      %s120 = sphi 0, %s119
      %s134 = sphi 0, %s120
      %s142 = sphi 0, %s144
      %s145 = sphi 0, %s142
      %s146 = sphi 0, %s145
      %s162 = sphi 0, %s146
    $region4: #{tpu_custom_call.1} parent=1 // loop_header_branch
      %19 = sbr.rel (%p17) target = $region8
    $region5: #{tpu_custom_call.1} parent=1 // loop_body
      %s21 = ssub.s32 %s16, 1
      %s22 = ssub.s32 %s16, 2
      %s29 = sadd.s32 1, %s24
      %p30 = scmp.ge.s32.totalorder %s29, 1
      %s31 = scalar_select %p30, 0, %s29
      %s32 = sadd.s32 1, %s23
      %s33 = scalar_select %p30, %s32, %s23
      %p34 = scmp.ge.s32.totalorder %s33, 2
      %s35 = scalar_select %p34, 0, %s33
      %s36 = ssub.s32 %s23, %s35
      %s37 = ssub.s32 %s24, %s31
      %s38 = sor.u32 %s36, %s37
      %p39 = scmp.eq.s32.totalorder %s38, 0
      %s41 = sadd.s32 %s40, 1
      %s42 = scalar_select %p39, %s40, %s41
      %p45 = pneg %p39
      %p46 = scmp.eq.s32.totalorder %s16, 1
      %p47 = por %p45, %p46
      %p48 = scmp.ne.s32.totalorder %s40, %s43
      %p49 = scmp.eq.s32.totalorder %s16, 0
      %p50 = por %p48, %p49
      %p51 = scmp.ne.s32.totalorder %s40, %s43
      %p52 = scmp.eq.s32.totalorder %s21, 1
      %p53 = por %p51, %p52
      %p54 = scmp.ne.s32.totalorder %s43, %s44
      %p55 = scmp.eq.s32.totalorder %s21, 0
      %p56 = por %p54, %p55
      %p57 = scmp.ne.s32.totalorder %s43, %s44
      %p58 = scmp.eq.s32.totalorder %s22, 1
      %p59 = por %p57, %p58
      %p61 = scmp.ne.s32.totalorder %s44, %s60
      %p62 = scmp.eq.s32.totalorder %s22, 0
      %p63 = por %p61, %p62
      %s64 = sadd.s32 %s24, 1
      %s65 = smul.u32 %s64, 8
      %s66 = sadd.s32 %s31, 1
      %s67 = smul.u32 %s66, 8
      %s68 = ssub.s32 %s23, %s35
      %s69 = ssub.s32 %s65, %s67
      %s70 = sor.u32 %s68, %s69
      %p71 = scmp.eq.s32.totalorder %s70, 0
      %s73 = sadd.s32 %s72, 1
      %s74 = scalar_select %p71, %s72, %s73
      %p77 = pneg %p71
      %p78 = scmp.eq.s32.totalorder %s16, 1
      %p79 = por %p77, %p78
      %p80 = scmp.ne.s32.totalorder %s72, %s75
      %p81 = scmp.eq.s32.totalorder %s16, 0
      %p82 = por %p80, %p81
      %p83 = scmp.ne.s32.totalorder %s72, %s75
      %p84 = scmp.eq.s32.totalorder %s21, 1
      %p85 = por %p83, %p84
      %p86 = scmp.ne.s32.totalorder %s75, %s76
      %p87 = scmp.eq.s32.totalorder %s21, 0
      %p88 = por %p86, %p87
      %p89 = scmp.ne.s32.totalorder %s75, %s76
      %p90 = scmp.eq.s32.totalorder %s22, 1
      %p91 = por %p89, %p90
      %p93 = scmp.ne.s32.totalorder %s76, %s92
      %p94 = scmp.eq.s32.totalorder %s22, 0
      %p95 = por %p93, %p94
      %s97 = sadd.s32 %s96, 1
      %p100 = scmp.eq.s32.totalorder %s16, 1
      %p101 = scmp.ne.s32.totalorder %s96, %s98
      %p102 = scmp.eq.s32.totalorder %s16, 0
      %p103 = por %p101, %p102
      %p104 = scmp.ne.s32.totalorder %s96, %s98
      %p105 = scmp.eq.s32.totalorder %s21, 1
      %p106 = por %p104, %p105
      %p107 = scmp.ne.s32.totalorder %s98, %s99
      %p108 = scmp.eq.s32.totalorder %s21, 0
      %p109 = por %p107, %p108
      %p110 = scmp.ne.s32.totalorder %s98, %s99
      %p111 = scmp.eq.s32.totalorder %s22, 1
      %p112 = por %p110, %p111
      %p114 = scmp.ne.s32.totalorder %s99, %s113
      %p115 = scmp.eq.s32.totalorder %s22, 0
      %p116 = por %p114, %p115
      %s118 = sadd.s32 %s117, 1
      %p121 = scmp.eq.s32.totalorder %s16, 1
      %p122 = scmp.ne.s32.totalorder %s117, %s119
      %p123 = scmp.eq.s32.totalorder %s16, 0
      %p124 = por %p122, %p123
      %p125 = scmp.ne.s32.totalorder %s117, %s119
      %p126 = scmp.eq.s32.totalorder %s21, 1
      %p127 = por %p125, %p126
      %p128 = scmp.ne.s32.totalorder %s119, %s120
      %p129 = scmp.eq.s32.totalorder %s21, 0
      %p130 = por %p128, %p129
      %p131 = scmp.ne.s32.totalorder %s119, %s120
      %p132 = scmp.eq.s32.totalorder %s22, 1
      %p133 = por %p131, %p132
      %p135 = scmp.ne.s32.totalorder %s120, %s134
      %p136 = scmp.eq.s32.totalorder %s22, 0
      %p137 = por %p135, %p136
      %s138 = ssub.s32 %s23, %s35
      %s139 = ssub.s32 %s24, %s31
      %s140 = sor.u32 %s138, %s139
      %p141 = scmp.eq.s32.totalorder %s140, 0
      %s143 = sadd.s32 %s142, 1
      %s144 = scalar_select %p141, %s142, %s143
      %p147 = pneg %p141
      %p148 = scmp.eq.s32.totalorder %s16, 1
      %p149 = por %p147, %p148
      %p150 = scmp.ne.s32.totalorder %s142, %s145
      %p151 = scmp.eq.s32.totalorder %s16, 0
      %p152 = por %p150, %p151
      %p153 = scmp.ne.s32.totalorder %s142, %s145
      %p154 = scmp.eq.s32.totalorder %s21, 1
      %p155 = por %p153, %p154
      %p156 = scmp.ne.s32.totalorder %s145, %s146
      %p157 = scmp.eq.s32.totalorder %s21, 0
      %p158 = por %p156, %p157
      %p159 = scmp.ne.s32.totalorder %s145, %s146
      %p160 = scmp.eq.s32.totalorder %s22, 1
      %p161 = por %p159, %p160
      %p163 = scmp.ne.s32.totalorder %s146, %s162
      %p164 = scmp.eq.s32.totalorder %s22, 0
      %p165 = por %p163, %p164
      %p166 = scmp.le.s32.totalorder 1, %s16
      %p167 = scmp.lt.s32.totalorder %s16, 3
      %p168 = pnand %p166, %p167
      %p169 = pneg %p168
      // Predicated region
      $region9: #{tpu_custom_call.1} parent=5 // pred_check
        _
      $region10: #{tpu_custom_call.1} parent=5 // pred_check_branch
        %171 = sbr.rel (%p168) target = $region12
      $region11: #{tpu_custom_call.1} parent=5 // pred_region
        %s172 = ssub.s32 %s16, 1
        // Predicated region
        $region13: #{tpu_custom_call.1} parent=11 // pred_check
          %p173 = pneg %p109
        $region14: #{tpu_custom_call.1} parent=11 // pred_check_branch
          %175 = sbr.rel (%p173) target = $region16
        $region15: #{tpu_custom_call.1} parent=11 // pred_region
          %s177 = ssub.s32 128, 128
          %178 = vsyncadd [#allocation5], %s177
          %s179 = sshll.u32 [#allocation6], 4
          %s180 = int_to_ptr.vmem [resolvable:$true] %s179
          %185 = dma.hbm_to_vmem [thread:$0]  %s2, 128, %s180, [#allocation5], 64, 64, 4
        $region16: #{tpu_custom_call.1} parent=11 // pred_fallthru
          _
        // Predicated region
        $region17: #{tpu_custom_call.1} parent=11 // pred_check
          %p186 = pneg %p130
        $region18: #{tpu_custom_call.1} parent=11 // pred_check_branch
          %188 = sbr.rel (%p186) target = $region20
        $region19: #{tpu_custom_call.1} parent=11 // pred_region
          _
        $region20: #{tpu_custom_call.1} parent=11 // pred_fallthru
          _
      $region12: #{tpu_custom_call.1} parent=5 // pred_fallthru
        _
      %p189 = scmp.lt.s32.totalorder %s16, 2
      // Predicated region
      $region21: #{tpu_custom_call.1} parent=5 // pred_check
        %p190 = pneg %p189
      $region22: #{tpu_custom_call.1} parent=5 // pred_check_branch
        %192 = sbr.rel (%p190) target = $region24
      $region23: #{tpu_custom_call.1} parent=5 // pred_region
        // Predicated region
        $region25: #{tpu_custom_call.1} parent=23 // pred_check
          %p193 = pneg %p50
        $region26: #{tpu_custom_call.1} parent=23 // pred_check_branch
          %195 = sbr.rel (%p193) target = $region28
        $region27: #{tpu_custom_call.1} parent=23 // pred_region
          %s196 = sand.u32 %s40, 1
          %s197 = scalar_lea.sflag [#allocation3], %s196
          %s198 = sand.u32 %s40, 1
          %s199 = smul.addr %s198, 64
          %s200 = scalar_lea.vmem [#allocation2], %s199
          %s201 = smul.u32 8, %s24
          %s202 = ssub.s32 9, %s201
          %p203 = scmp.lt.s32.totalorder %s202, 8
          %s204 = scalar_select %p203, %s202, 8
          %s205 = smul.u32 64, %s204
          %s206 = smul.u32 %s205, 2
          %s208 = ssub.s32 1024, %s206
          %209 = vsyncadd %s197, %s208
          %p210 = scmp.ne.s32.totalorder 0, %s206
          %s211 = smul.addr %s201, 2
          %s212 = smul.addr %s23, 18
          %s213 = sadd.s32 %s211, %s212
          %s214 = smul.addr %s213, 64
          %s215 = scalar_lea.hbm %s0, %s214
          %s216 = smul.u32 %s204, 2
          %s217 = smul.u32 4, %s216
          %s218 = sshll.u32 %s200, 4
          %s219 = int_to_ptr.vmem [resolvable:$true] %s218
          %s220 = sshll.u32 %s217, 4
          %224 = dma.hbm_to_vmem [thread:$0]  (%p210), %s215, %s220, %s219, %s197, 64, 64, 4
        $region28: #{tpu_custom_call.1} parent=23 // pred_fallthru
          _
        // Predicated region
        $region29: #{tpu_custom_call.1} parent=23 // pred_check
          %p225 = pneg %p82
        $region30: #{tpu_custom_call.1} parent=23 // pred_check_branch
          %227 = sbr.rel (%p225) target = $region32
        $region31: #{tpu_custom_call.1} parent=23 // pred_region
          %s228 = sand.u32 %s16, 1
          %s229 = scalar_lea.sflag [#allocation5], %s228
          %s230 = sand.u32 %s72, 1
          %s231 = smul.addr %s230, 8
          %s232 = scalar_lea.vmem [#allocation4], %s231
          %s233 = sadd.s32 %s24, 1
          %s234 = smul.u32 %s233, 8
          %s236 = ssub.s32 128, 128
          %237 = vsyncadd %s229, %s236
          %s238 = smul.addr %s234, 2
          %s239 = smul.addr %s23, 18
          %s240 = sadd.s32 %s238, %s239
          %s241 = smul.addr %s240, 64
          %s242 = scalar_lea.hbm %s1, %s241
          %s243 = sshll.u32 %s232, 4
          %s244 = int_to_ptr.vmem [resolvable:$true] %s243
          %249 = dma.hbm_to_vmem [thread:$0]  %s242, 128, %s244, %s229, 64, 64, 4
        $region32: #{tpu_custom_call.1} parent=23 // pred_fallthru
          _
      $region24: #{tpu_custom_call.1} parent=5 // pred_fallthru
        _
      %p250 = scmp.le.s32.totalorder 1, %s16
      %p251 = scmp.lt.s32.totalorder %s16, 3
      %p252 = pnand %p250, %p251
      %p253 = pneg %p252
      // Predicated region
      $region33: #{tpu_custom_call.1} parent=5 // pred_check
        _
      $region34: #{tpu_custom_call.1} parent=5 // pred_check_branch
        %255 = sbr.rel (%p252) target = $region36
      $region35: #{tpu_custom_call.1} parent=5 // pred_region
        %s256 = ssub.s32 %s16, 1
        %s257 = sand.u32 %s43, 1
        %s258 = scalar_lea.sflag [#allocation3], %s257
        %s259 = sand.u32 %s43, 1
        %s260 = smul.addr %s259, 64
        %s261 = scalar_lea.vmem [#allocation2], %s260
        // Predicated region
        $region37: #{tpu_custom_call.1} parent=35 // pred_check
          %p262 = pneg %p56
        $region38: #{tpu_custom_call.1} parent=35 // pred_check_branch
          %264 = sbr.rel (%p262) target = $region40
        $region39: #{tpu_custom_call.1} parent=35 // pred_region
          %265 = dma.done %s258, 1024
        $region40: #{tpu_custom_call.1} parent=35 // pred_fallthru
          _
        %s266 = sand.u32 %s21, 1
        %s267 = scalar_lea.sflag [#allocation5], %s266
        %s268 = sand.u32 %s75, 1
        %s269 = smul.addr %s268, 8
        %s270 = scalar_lea.vmem [#allocation4], %s269
        // Predicated region
        $region41: #{tpu_custom_call.1} parent=35 // pred_check
          %p271 = pneg %p88
        $region42: #{tpu_custom_call.1} parent=35 // pred_check_branch
          %273 = sbr.rel (%p271) target = $region44
        $region43: #{tpu_custom_call.1} parent=35 // pred_region
          %274 = dma.done %s267, 128
        $region44: #{tpu_custom_call.1} parent=35 // pred_fallthru
          _
        // Predicated region
        $region45: #{tpu_custom_call.1} parent=35 // pred_check
          %p275 = pneg %p109
        $region46: #{tpu_custom_call.1} parent=35 // pred_check_branch
          %277 = sbr.rel (%p275) target = $region48
        $region47: #{tpu_custom_call.1} parent=35 // pred_region
          %278 = dma.done [#allocation5], 128
        $region48: #{tpu_custom_call.1} parent=35 // pred_fallthru
          _
        %s279 = sand.u32 %s43, 1
        %s280 = scalar_lea.sflag [#allocation3], %s279
        %s281 = sand.u32 %s43, 1
        %s282 = smul.addr %s281, 64
        %s283 = scalar_lea.vmem [#allocation2], %s282
        %p284 = pneg %p56
        %p285 = pneg %p53
        %s286 = sand.u32 %s21, 1
        %s287 = scalar_lea.sflag [#allocation5], %s286
        %s288 = sand.u32 %s75, 1
        %s289 = smul.addr %s288, 8
        %s290 = scalar_lea.vmem [#allocation4], %s289
        %p291 = pneg %p88
        %p292 = pneg %p85
        %p293 = pneg %p109
        %p294 = pneg %p106
        %p295 = pneg %p130
        %p296 = pneg %p127
        %p297 = pneg %p158
        %p298 = pneg %p155
        %s299 = smul.u32 8, %s26
        %p300 = scmp.lt.s32.totalorder %s25, 1
        %s301 = scalar_select %p300, %s25, 1
        %p302 = scmp.lt.s32.totalorder %s299, 7
        %s303 = scalar_select %p302, %s299, 7
        %s304 = smul.addr %s303, 2
        %s305 = smul.addr %s301, 16
        %s306 = sadd.s32 %s304, %s305
        %s307 = smul.addr %s306, 8
        %s308 = scalar_lea.vmem %s4, %s307
        %s309 = smul.u32 8, %s26
        %s310 = ssub.s32 9, %s309
        %p311 = scmp.lt.s32.totalorder %s310, 8
        %s312 = scalar_select %p311, %s310, 8
        %s313 = smul.u32 64, %s312
        %s314 = smul.u32 %s313, 2
        %s315 = sadd.s32 %s26, 1
        %s316 = smul.u32 %s315, 8
        %s317 = smul.u32 8, %s26
        %p318 = scmp.lt.s32.totalorder %s25, 1
        %s319 = scalar_select %p318, %s25, 1
        %p320 = scmp.lt.s32.totalorder %s317, 7
        %s321 = scalar_select %p320, %s317, 7
        %s322 = smul.addr %s321, 2
        %s323 = smul.addr %s319, 16
        %s324 = sadd.s32 %s322, %s323
        %s325 = smul.addr %s324, 8
        %s326 = scalar_lea.vmem %s4, %s325
        %s327 = smul.u32 8, %s26
        %v329 = vld [vmem:[%s261] sm:$0xf]
        %v330 = vld [vmem:[%s261 + $0x4] sm:$0xf]
        %v331 = vld [vmem:[%s261 + $0x8] sm:$0xf]
        %v332 = vld [vmem:[%s261 + $0xc] sm:$0xf]
        %v333 = vld [vmem:[%s261 + $0x10] sm:$0xf]
        %v334 = vld [vmem:[%s261 + $0x14] sm:$0xf]
        %v335 = vld [vmem:[%s261 + $0x18] sm:$0xf]
        %v336 = vld [vmem:[%s261 + $0x1c] sm:$0xf]
        %v337 = vld [vmem:[%s261 + $0x20] sm:$0xf]
        %v338 = vld [vmem:[%s261 + $0x24] sm:$0xf]
        %v339 = vld [vmem:[%s261 + $0x28] sm:$0xf]
        %v340 = vld [vmem:[%s261 + $0x2c] sm:$0xf]
        %v341 = vld [vmem:[%s261 + $0x30] sm:$0xf]
        %v342 = vld [vmem:[%s261 + $0x34] sm:$0xf]
        %v343 = vld [vmem:[%s261 + $0x38] sm:$0xf]
        %v344 = vld [vmem:[%s261 + $0x3c] sm:$0xf]
        %v345 = vld [vmem:[%s270] sm:$0xf]
        %v346 = vld [vmem:[%s270 + $0x4] sm:$0xf]
        %v347 = vld [vmem:[#allocation6] sm:$0xf]
        %v348 = vld [vmem:[#allocation6 + $0x4] sm:$0xf]
        %v365 = vunpack.c.l.b16 %v329
        %v366 = vunpack.c.l.b16 %v330
        %v367 = vunpack.c.l.b16 %v331
        %v368 = vunpack.c.l.b16 %v332
        %v369 = vunpack.c.l.b16 %v333
        %v370 = vunpack.c.l.b16 %v334
        %v371 = vunpack.c.l.b16 %v335
        %v372 = vunpack.c.l.b16 %v336
        %v373 = vunpack.c.l.b16 %v337
        %v374 = vunpack.c.l.b16 %v338
        %v375 = vunpack.c.l.b16 %v339
        %v376 = vunpack.c.l.b16 %v340
        %v377 = vunpack.c.l.b16 %v341
        %v378 = vunpack.c.l.b16 %v342
        %v379 = vunpack.c.l.b16 %v343
        %v380 = vunpack.c.l.b16 %v344
        %v381 = vpack.c.b16 %v366, %v365
        %v382 = vpack.c.b16 %v368, %v367
        %v383 = vpack.c.b16 %v370, %v369
        %v384 = vpack.c.b16 %v372, %v371
        %v385 = vpack.c.b16 %v374, %v373
        %v386 = vpack.c.b16 %v376, %v375
        %v387 = vpack.c.b16 %v378, %v377
        %v388 = vpack.c.b16 %v380, %v379
        %v391 = vunpack.c.l.b16 %v347
        %v392 = vunpack.c.l.b16 %v348
        %v393 = vpack.c.b16 %v392, %v391
        %vm395 = vcmask 130048
        %v397 = vsel %vm395, %v381, 0
        %v400 = vsel %vm395, %v382, 0
        %v403 = vsel %vm395, %v383, 0
        %v406 = vsel %vm395, %v384, 0
        %v409 = vsel %vm395, %v385, 0
        %v412 = vsel %vm395, %v386, 0
        %v415 = vsel %vm395, %v387, 0
        %v418 = vsel %vm395, %v388, 0
        %420 = vmatprep.subr.bf16.mxu0 0
        %421 = vmatpush1.bf16.msra.mxu0 %v393
        %422 = vmatprep.subr.bf16.mxu0 0
        %423 = vmatpush1.bf16.msra.mxu0 0
        %424 = vmatprep.subr.bf16.mxu0 0
        %425 = vmatpush1.bf16.msra.mxu0 0
        %426 = vmatprep.subr.bf16.mxu0 0
        %427 = vmatpush1.bf16.msra.mxu0 0
        %428 = vmatprep.subr.bf16.mxu0 0
        %429 = vmatpush1.bf16.msra.mxu0 0
        %430 = vmatprep.subr.bf16.mxu0 0
        %431 = vmatpush1.bf16.msra.mxu0 0
        %432 = vmatprep.subr.bf16.mxu0 0
        %433 = vmatpush1.bf16.msra.mxu0 0
        %434 = vmatprep.subr.bf16.mxu0 0
        %435 = vmatpush1.bf16.msra.mxu0 0
        %436 = vmatprep.subr.bf16.mxu0 0
        %437 = vmatpush1.bf16.msra.mxu0 0
        %438 = vmatprep.subr.bf16.mxu0 0
        %439 = vmatpush1.bf16.msra.mxu0 0
        %440 = vmatprep.subr.bf16.mxu0 0
        %441 = vmatpush1.bf16.msra.mxu0 0
        %442 = vmatprep.subr.bf16.mxu0 0
        %443 = vmatpush1.bf16.msra.mxu0 0
        %444 = vmatprep.subr.bf16.mxu0 0
        %445 = vmatpush1.bf16.msra.mxu0 0
        %446 = vmatprep.subr.bf16.mxu0 0
        %447 = vmatpush1.bf16.msra.mxu0 0
        %448 = vmatprep.subr.bf16.mxu0 0
        %449 = vmatpush1.bf16.msra.mxu0 0
        %450 = vmatprep.subr.bf16.mxu0 0
        %451 = vmatpush1.bf16.msra.mxu0 0
        %452 = vmatprep.mubr.bf16.mxu0 0
        %453 = vmatmul.mubr.bf16.gmra.mrb[0].mxu0 %v397
        %v454 = vpop.f32.mrb[0].mxu0
        %v455 = vadd.f32 0.0, %v454
        %v456 = vpop.f32.mrb[0].mxu0
        %v457 = vpop.f32.mrb[0].mxu0
        %v458 = vadd.f32 0.0, %v457
        %v459 = vpop.f32.mrb[0].mxu0
        %460 = vmatprep.mubr.bf16.mxu0 0
        %461 = vmatmul.mubr.bf16.gmra.mrb[0].mxu0 %v400
        %v462 = vpop.f32.mrb[0].mxu0
        %v463 = vadd.f32 0.0, %v462
        %v464 = vpop.f32.mrb[0].mxu0
        %v465 = vpop.f32.mrb[0].mxu0
        %v466 = vadd.f32 0.0, %v465
        %v467 = vpop.f32.mrb[0].mxu0
        %468 = vmatprep.mubr.bf16.mxu0 0
        %469 = vmatmul.mubr.bf16.gmra.mrb[0].mxu0 %v403
        %v470 = vpop.f32.mrb[0].mxu0
        %v471 = vadd.f32 0.0, %v470
        %v472 = vpop.f32.mrb[0].mxu0
        %v473 = vpop.f32.mrb[0].mxu0
        %v474 = vadd.f32 0.0, %v473
        %v475 = vpop.f32.mrb[0].mxu0
        %476 = vmatprep.mubr.bf16.mxu0 0
        %477 = vmatmul.mubr.bf16.gmra.mrb[0].mxu0 %v406
        %v478 = vpop.f32.mrb[0].mxu0
        %v479 = vadd.f32 0.0, %v478
        %v480 = vpop.f32.mrb[0].mxu0
        %v481 = vpop.f32.mrb[0].mxu0
        %v482 = vadd.f32 0.0, %v481
        %v483 = vpop.f32.mrb[0].mxu0
        %484 = vmatprep.mubr.bf16.mxu0 0
        %485 = vmatmul.mubr.bf16.gmra.mrb[0].mxu0 %v409
        %v486 = vpop.f32.mrb[0].mxu0
        %v487 = vadd.f32 0.0, %v486
        %v488 = vpop.f32.mrb[0].mxu0
        %v489 = vpop.f32.mrb[0].mxu0
        %v490 = vadd.f32 0.0, %v489
        %v491 = vpop.f32.mrb[0].mxu0
        %492 = vmatprep.mubr.bf16.mxu0 0
        %493 = vmatmul.mubr.bf16.gmra.mrb[0].mxu0 %v412
        %v494 = vpop.f32.mrb[0].mxu0
        %v495 = vadd.f32 0.0, %v494
        %v496 = vpop.f32.mrb[0].mxu0
        %v497 = vpop.f32.mrb[0].mxu0
        %v498 = vadd.f32 0.0, %v497
        %v499 = vpop.f32.mrb[0].mxu0
        %500 = vmatprep.mubr.bf16.mxu0 0
        %501 = vmatmul.mubr.bf16.gmra.mrb[0].mxu0 %v415
        %v502 = vpop.f32.mrb[0].mxu0
        %v503 = vadd.f32 0.0, %v502
        %v504 = vpop.f32.mrb[0].mxu0
        %v505 = vpop.f32.mrb[0].mxu0
        %v506 = vadd.f32 0.0, %v505
        %v507 = vpop.f32.mrb[0].mxu0
        %508 = vmatprep.mubr.bf16.mxu0 0
        %509 = vmatmul.mubr.bf16.gmra.mrb[0].mxu0 %v418
        %v510 = vpop.f32.mrb[0].mxu0
        %v511 = vadd.f32 0.0, %v510
        %v512 = vpop.f32.mrb[0].mxu0
        %v513 = vpop.f32.mrb[0].mxu0
        %v514 = vadd.f32 0.0, %v513
        %v515 = vpop.f32.mrb[0].mxu0
        %516 = vdwg.mxu0
        %v519 = vunpack.c.l.b16 %v345
        %v520 = vunpack.c.l.b16 %v346
        %v521 = vpack.c.b16 %v520, %v519
        %v523 = vsel %vm395, %v521, 0
        %525 = vmatprep.subr.bf16.mxu0 0
        %526 = vmatpush1.bf16.msra.mxu0 %v393
        %527 = vmatprep.subr.bf16.mxu0 0
        %528 = vmatpush1.bf16.msra.mxu0 0
        %529 = vmatprep.subr.bf16.mxu0 0
        %530 = vmatpush1.bf16.msra.mxu0 0
        %531 = vmatprep.subr.bf16.mxu0 0
        %532 = vmatpush1.bf16.msra.mxu0 0
        %533 = vmatprep.subr.bf16.mxu0 0
        %534 = vmatpush1.bf16.msra.mxu0 0
        %535 = vmatprep.subr.bf16.mxu0 0
        %536 = vmatpush1.bf16.msra.mxu0 0
        %537 = vmatprep.subr.bf16.mxu0 0
        %538 = vmatpush1.bf16.msra.mxu0 0
        %539 = vmatprep.subr.bf16.mxu0 0
        %540 = vmatpush1.bf16.msra.mxu0 0
        %541 = vmatprep.subr.bf16.mxu0 0
        %542 = vmatpush1.bf16.msra.mxu0 0
        %543 = vmatprep.subr.bf16.mxu0 0
        %544 = vmatpush1.bf16.msra.mxu0 0
        %545 = vmatprep.subr.bf16.mxu0 0
        %546 = vmatpush1.bf16.msra.mxu0 0
        %547 = vmatprep.subr.bf16.mxu0 0
        %548 = vmatpush1.bf16.msra.mxu0 0
        %549 = vmatprep.subr.bf16.mxu0 0
        %550 = vmatpush1.bf16.msra.mxu0 0
        %551 = vmatprep.subr.bf16.mxu0 0
        %552 = vmatpush1.bf16.msra.mxu0 0
        %553 = vmatprep.subr.bf16.mxu0 0
        %554 = vmatpush1.bf16.msra.mxu0 0
        %555 = vmatprep.subr.bf16.mxu0 0
        %556 = vmatpush1.bf16.msra.mxu0 0
        %557 = vmatprep.mubr.bf16.mxu0 0
        %558 = vmatmul.mubr.bf16.gmra.mrb[0].mxu0 %v523
        %v559 = vpop.f32.mrb[0].mxu0
        %v560 = vadd.f32 0.0, %v559
        %v561 = vpop.f32.mrb[0].mxu0
        %v562 = vpop.f32.mrb[0].mxu0
        %v563 = vadd.f32 0.0, %v562
        %v564 = vpop.f32.mrb[0].mxu0
        %565 = vdwg.mxu0
        %582 = vrot.lane.b32.xlu0 %v463, 120
        %v583 = vpop.permute.xlu0 %582
        %584 = vrot.lane.b32.xlu0 %v466, 120
        %v585 = vpop.permute.xlu0 %584
        %586 = vrot.lane.b32.xlu0 %v471, 120
        %v587 = vpop.permute.xlu0 %586
        %588 = vrot.lane.b32.xlu0 %v474, 120
        %v589 = vpop.permute.xlu0 %588
        %590 = vrot.lane.b32.xlu0 %v479, 120
        %v591 = vpop.permute.xlu0 %590
        %592 = vrot.lane.b32.xlu0 %v482, 120
        %v593 = vpop.permute.xlu0 %592
        %594 = vrot.lane.b32.xlu0 %v487, 120
        %v595 = vpop.permute.xlu0 %594
        %596 = vrot.lane.b32.xlu0 %v490, 120
        %v597 = vpop.permute.xlu0 %596
        %598 = vrot.lane.b32.xlu0 %v495, 120
        %v599 = vpop.permute.xlu0 %598
        %600 = vrot.lane.b32.xlu0 %v498, 120
        %v601 = vpop.permute.xlu0 %600
        %602 = vrot.lane.b32.xlu0 %v503, 120
        %v603 = vpop.permute.xlu0 %602
        %604 = vrot.lane.b32.xlu0 %v506, 120
        %v605 = vpop.permute.xlu0 %604
        %606 = vrot.lane.b32.xlu0 %v511, 120
        %v607 = vpop.permute.xlu0 %606
        %608 = vrot.lane.b32.xlu0 %v514, 120
        %v609 = vpop.permute.xlu0 %608
        %610 = vrot.lane.b32.xlu0 %v560, 120
        %v611 = vpop.permute.xlu0 %610
        %612 = vrot.lane.b32.xlu0 %v563, 120
        %v613 = vpop.permute.xlu0 %612
        %v630 = vadd.f32 %v455, %v583
        %v631 = vadd.f32 %v458, %v585
        %v632 = vadd.f32 %v463, %v587
        %v633 = vadd.f32 %v466, %v589
        %v634 = vadd.f32 %v471, %v591
        %v635 = vadd.f32 %v474, %v593
        %v636 = vadd.f32 %v479, %v595
        %v637 = vadd.f32 %v482, %v597
        %v638 = vadd.f32 %v487, %v599
        %v639 = vadd.f32 %v490, %v601
        %v640 = vadd.f32 %v495, %v603
        %v641 = vadd.f32 %v498, %v605
        %v642 = vadd.f32 %v503, %v607
        %v643 = vadd.f32 %v506, %v609
        %v644 = vadd.f32 %v511, %v611
        %v645 = vadd.f32 %v514, %v613
        %vm662 = vcmask 1046528
        %v663 = vrot.slane %v630, 1
        %v664 = vrot.slane %v631, 1
        %v665 = vsel %vm662, %v663, %v664
        %v666 = vrot.slane %v632, 1
        %v667 = vsel %vm662, %v664, %v666
        %v668 = vrot.slane %v633, 1
        %v669 = vsel %vm662, %v666, %v668
        %v670 = vrot.slane %v634, 1
        %v671 = vsel %vm662, %v668, %v670
        %v672 = vrot.slane %v635, 1
        %v673 = vsel %vm662, %v670, %v672
        %v674 = vrot.slane %v636, 1
        %v675 = vsel %vm662, %v672, %v674
        %v676 = vrot.slane %v637, 1
        %v677 = vsel %vm662, %v674, %v676
        %v678 = vrot.slane %v638, 1
        %v679 = vsel %vm662, %v676, %v678
        %v680 = vrot.slane %v639, 1
        %v681 = vsel %vm662, %v678, %v680
        %v682 = vrot.slane %v640, 1
        %v683 = vsel %vm662, %v680, %v682
        %v684 = vrot.slane %v641, 1
        %v685 = vsel %vm662, %v682, %v684
        %v686 = vrot.slane %v642, 1
        %v687 = vsel %vm662, %v684, %v686
        %v688 = vrot.slane %v643, 1
        %v689 = vsel %vm662, %v686, %v688
        %v690 = vrot.slane %v644, 1
        %v691 = vsel %vm662, %v688, %v690
        %v692 = vrot.slane %v645, 1
        %v693 = vsel %vm662, %v690, %v692
        %v696 = vsel %vm662, %v692, %v663
        %698 = vrot.lane.b32.xlu0 %v665, 124
        %v699 = vpop.permute.xlu0 %698
        %700 = vrot.lane.b32.xlu0 %v667, 124
        %v701 = vpop.permute.xlu0 %700
        %702 = vrot.lane.b32.xlu0 %v669, 124
        %v703 = vpop.permute.xlu0 %702
        %704 = vrot.lane.b32.xlu0 %v671, 124
        %v705 = vpop.permute.xlu0 %704
        %706 = vrot.lane.b32.xlu0 %v673, 124
        %v707 = vpop.permute.xlu0 %706
        %708 = vrot.lane.b32.xlu0 %v675, 124
        %v709 = vpop.permute.xlu0 %708
        %710 = vrot.lane.b32.xlu0 %v677, 124
        %v711 = vpop.permute.xlu0 %710
        %712 = vrot.lane.b32.xlu0 %v679, 124
        %v713 = vpop.permute.xlu0 %712
        %714 = vrot.lane.b32.xlu0 %v681, 124
        %v715 = vpop.permute.xlu0 %714
        %716 = vrot.lane.b32.xlu0 %v683, 124
        %v717 = vpop.permute.xlu0 %716
        %718 = vrot.lane.b32.xlu0 %v685, 124
        %v719 = vpop.permute.xlu0 %718
        %720 = vrot.lane.b32.xlu0 %v687, 124
        %v721 = vpop.permute.xlu0 %720
        %722 = vrot.lane.b32.xlu0 %v689, 124
        %v723 = vpop.permute.xlu0 %722
        %724 = vrot.lane.b32.xlu0 %v691, 124
        %v725 = vpop.permute.xlu0 %724
        %726 = vrot.lane.b32.xlu0 %v693, 124
        %v727 = vpop.permute.xlu0 %726
        %728 = vrot.lane.b32.xlu0 %v696, 124
        %v729 = vpop.permute.xlu0 %728
        %v746 = vadd.f32 %v630, %v699
        %v747 = vadd.f32 %v631, %v701
        %v748 = vadd.f32 %v632, %v703
        %v749 = vadd.f32 %v633, %v705
        %v750 = vadd.f32 %v634, %v707
        %v751 = vadd.f32 %v635, %v709
        %v752 = vadd.f32 %v636, %v711
        %v753 = vadd.f32 %v637, %v713
        %v754 = vadd.f32 %v638, %v715
        %v755 = vadd.f32 %v639, %v717
        %v756 = vadd.f32 %v640, %v719
        %v757 = vadd.f32 %v641, %v721
        %v758 = vadd.f32 %v642, %v723
        %v759 = vadd.f32 %v643, %v725
        %v760 = vadd.f32 %v644, %v727
        %v761 = vadd.f32 %v645, %v729
        %v762 = vld [vmem:[%s3] sm:$0x1]
        %v764 = vlaneseq
        %v765 = vshrl.u32 %v764, 7
        %v766 = vsub.s32 0, %v765
        %v767 = vrot.slane %v762, %v766
        %v769 = vadd.f32 %v746, %v767
        %v770 = vadd.f32 %v747, %v767
        %v771 = vadd.f32 %v748, %v767
        %v772 = vadd.f32 %v749, %v767
        %v773 = vadd.f32 %v750, %v767
        %v774 = vadd.f32 %v751, %v767
        %v775 = vadd.f32 %v752, %v767
        %v776 = vadd.f32 %v753, %v767
        %v777 = vadd.f32 %v754, %v767
        %v778 = vadd.f32 %v755, %v767
        %v779 = vadd.f32 %v756, %v767
        %v780 = vadd.f32 %v757, %v767
        %v781 = vadd.f32 %v758, %v767
        %v782 = vadd.f32 %v759, %v767
        %v783 = vadd.f32 %v760, %v767
        %v784 = vadd.f32 %v761, %v767
        %vm785 = vcmask 31744
        %786 = vst.msk [vmem:[%s326] sm:$0xff] %vm785, %v769
        %787 = vst.msk [vmem:[%s326 + $0x8] sm:$0xff] %vm785, %v770
        %788 = vst.msk [vmem:[%s326 + $0x10] sm:$0xff] %vm785, %v771
        %789 = vst.msk [vmem:[%s326 + $0x18] sm:$0xff] %vm785, %v772
        %790 = vst.msk [vmem:[%s326 + $0x20] sm:$0xff] %vm785, %v773
        %791 = vst.msk [vmem:[%s326 + $0x28] sm:$0xff] %vm785, %v774
        %792 = vst.msk [vmem:[%s326 + $0x30] sm:$0xff] %vm785, %v775
        %793 = vst.msk [vmem:[%s326 + $0x38] sm:$0xff] %vm785, %v776
        %794 = vst.msk [vmem:[%s326 + $0x40] sm:$0xff] %vm785, %v777
        %795 = vst.msk [vmem:[%s326 + $0x48] sm:$0xff] %vm785, %v778
        %796 = vst.msk [vmem:[%s326 + $0x50] sm:$0xff] %vm785, %v779
        %797 = vst.msk [vmem:[%s326 + $0x58] sm:$0xff] %vm785, %v780
        %798 = vst.msk [vmem:[%s326 + $0x60] sm:$0xff] %vm785, %v781
        %799 = vst.msk [vmem:[%s326 + $0x68] sm:$0xff] %vm785, %v782
        %800 = vst.msk [vmem:[%s326 + $0x70] sm:$0xff] %vm785, %v783
        %801 = vst.msk [vmem:[%s326 + $0x78] sm:$0xff] %vm785, %v784
        %s802 = smul.u32 8, %s26
        %p803 = scmp.lt.s32.totalorder %s25, 1
        %s804 = scalar_select %p803, %s25, 1
        %p805 = scmp.lt.s32.totalorder %s802, 7
        %s806 = scalar_select %p805, %s802, 7
        %s807 = smul.addr %s806, 2
        %s808 = smul.addr %s804, 16
        %s809 = sadd.s32 %s807, %s808
        %s810 = smul.addr %s809, 8
        %s811 = scalar_lea.vmem %s4, %s810
        // Predicated region
        $region49: #{tpu_custom_call.1} parent=35 // pred_check
          %p812 = pneg %p155
        $region50: #{tpu_custom_call.1} parent=35 // pred_check_branch
          %814 = sbr.rel (%p812) target = $region52
        $region51: #{tpu_custom_call.1} parent=35 // pred_region
          %s815 = smul.u32 8, %s26
        $region52: #{tpu_custom_call.1} parent=35 // pred_fallthru
          _
      $region36: #{tpu_custom_call.1} parent=5 // pred_fallthru
        _
      %p816 = scmp.le.s32.totalorder 2, %s16
      // Predicated region
      $region53: #{tpu_custom_call.1} parent=5 // pred_check
        %p817 = pneg %p816
      $region54: #{tpu_custom_call.1} parent=5 // pred_check_branch
        %819 = sbr.rel (%p817) target = $region56
      $region55: #{tpu_custom_call.1} parent=5 // pred_region
        %s820 = ssub.s32 %s16, 2
        // Predicated region
        $region57: #{tpu_custom_call.1} parent=55 // pred_check
          %p821 = pneg %p161
        $region58: #{tpu_custom_call.1} parent=55 // pred_check_branch
          %823 = sbr.rel (%p821) target = $region60
        $region59: #{tpu_custom_call.1} parent=55 // pred_region
          %s824 = smul.u32 8, %s28
          %p825 = scmp.lt.s32.totalorder %s27, 1
          %s826 = scalar_select %p825, %s27, 1
          %p827 = scmp.lt.s32.totalorder %s824, 7
          %s828 = scalar_select %p827, %s824, 7
          %s829 = smul.addr %s828, 2
          %s830 = smul.addr %s826, 16
          %s831 = sadd.s32 %s829, %s830
          %s832 = smul.addr %s831, 8
          %s833 = scalar_lea.vmem %s4, %s832
        $region60: #{tpu_custom_call.1} parent=55 // pred_fallthru
          _
      $region56: #{tpu_custom_call.1} parent=5 // pred_fallthru
        _
    $region6: #{tpu_custom_call.1} parent=1 // loop_footer
      %s20 = sadd.s32 1, %s16
    $region7: #{tpu_custom_call.1} parent=1 // loop_footer_branch
      %15 = sbr.rel target = $region3
    $region8: #{tpu_custom_call.1} parent=1 // loop_exit
      _
    %834 = vsyncpa [#allocation3], 1
    %s835 = scalar_lea.sflag [#allocation3], 1
    %836 = vsyncpa %s835, 1
    %837 = vsyncpa [#allocation5], 1
    %s838 = scalar_lea.sflag [#allocation5], 1
    %839 = vsyncpa %s838, 1

</llo_original>
